<compile_context>
chip_gen: v6e
topology: v6e:2x2x1
jax: 0.10.0
libtpu: 0.0.40
codegen_flags: <defaults>
</compile_context>

<pallas_src>
import math

import jax
import jax.numpy as jnp
from jax.experimental import pallas as pl
from jax.experimental.pallas import tpu as pltpu


# ------------------------------------------------------------------ projection with fused head split
def linear_proj_heads(x, w, b, num_heads, *, out_dtype=jnp.bfloat16, tl=512):
    """y = x @ w + b, emitted directly in (B, H, L, D) head-major layout.

    x: (B, L, Din) bf16, w: (Din, Dout) bf16, b: (Dout,) f32.
    Grid (B, L_tiles); w/b block index is constant so they are DMA'd once and reused.
    """
    B, L, Din = x.shape
    Dout = w.shape[1]
    H = num_heads
    D = Dout // H
    tl = min(tl, L)

    def kernel(x_ref, w_ref, b_ref, o_ref):
        acc = jnp.dot(x_ref[0], w_ref[...], preferred_element_type=jnp.float32)
        acc = acc + b_ref[...].astype(jnp.float32)
        acc = acc.astype(o_ref.dtype)                      # (tl, H*D)
        for h in range(H):                                 # static unroll: per-head lane slice
            o_ref[0, h] = acc[:, h * D:(h + 1) * D]

    return pl.pallas_call(
        kernel,
        out_shape=jax.ShapeDtypeStruct((B, H, L, D), out_dtype),
        grid=(B, pl.cdiv(L, tl)),
        in_specs=[
            pl.BlockSpec((1, tl, Din), lambda bi, i: (bi, i, 0)),
            pl.BlockSpec((Din, Dout), lambda bi, i: (0, 0)),
            pl.BlockSpec((1, Dout), lambda bi, i: (0, 0)),
        ],
        out_specs=pl.BlockSpec((1, H, tl, D), lambda bi, i: (bi, 0, i, 0)),
        compiler_params=pltpu.CompilerParams(
            dimension_semantics=("parallel", "parallel")),
    )(x, w, b.reshape(1, Dout))


# ------------------------------------------------------------------ plain row-tiled linear (fc_out)
def linear(x2d, w, b, *, out_dtype=jnp.float32, tm=512):
    """y = x @ w + b, row-tiled (tm=512 per mem-bound tiling guidance)."""
    N, Din = x2d.shape
    Dout = w.shape[1]
    tm = min(tm, N)

    def kernel(x_ref, w_ref, b_ref, o_ref):
        acc = jnp.dot(x_ref[...], w_ref[...], preferred_element_type=jnp.float32)
        o_ref[...] = (acc + b_ref[...].astype(jnp.float32)).astype(o_ref.dtype)

    return pl.pallas_call(
        kernel,
        out_shape=jax.ShapeDtypeStruct((N, Dout), out_dtype),
        grid=(pl.cdiv(N, tm),),
        in_specs=[
            pl.BlockSpec((tm, Din), lambda i: (i, 0)),
            pl.BlockSpec((Din, Dout), lambda i: (0, 0)),
            pl.BlockSpec((1, Dout), lambda i: (0, 0)),
        ],
        out_specs=pl.BlockSpec((tm, Dout), lambda i: (i, 0)),
        compiler_params=pltpu.CompilerParams(dimension_semantics=("parallel",)),
    )(x2d, w, b.reshape(1, Dout))


# ------------------------------------------------------------------ sparsity measure M (no K_samp)
def sparsity_measure(Q, K, counts_T, l_k, *, tq=256):
    """M[b,h,i] = max_{j in sample(i)} (q_i . k_j)  -  (1/L_K) * sum_{j in sample(i)} (q_i . k_j).

    Q: (B,H,L_Q,D) bf16, K: (B,H,L_K,D) bf16,
    counts_T: (L_K, L_Q) bf16 with counts_T[k,i] = #times key k was sampled for query i
              (shared across B,H; exact small integers).
    Scores are computed on the MXU per (b,h) query-tile and never leave VMEM.

    TODO(synk): replace the count-mask formulation with an in-kernel sampled-row gather
    (dynamic_gather / jnp.take on the VMEM-resident K) once gather lowering constraints are
    verified -- that cuts MXU work from O(L_Q*L_K*D) to O(L_Q*U_part*D) per (b,h).
    """
    B, H, L_Q, D = Q.shape
    L_K = K.shape[2]
    tq = min(tq, L_Q)
    inv_lk = 1.0 / float(l_k)

    def kernel(cnt_ref, q_ref, k_ref, m_ref):
        q = q_ref[0, 0]                                              # (TQ, D)  bf16
        kk = k_ref[0, 0]                                             # (L_K, D) bf16
        # s_t[k, i] = K[k] . Q[i]  (MXU, f32 accumulation)
        s_t = jax.lax.dot_general(kk, q, (((1,), (1,)), ((), ())),
                                  preferred_element_type=jnp.float32)  # (L_K, TQ)
        cnt = cnt_ref[...].astype(jnp.float32)                       # (L_K, TQ)
        m_max = jnp.max(jnp.where(cnt > 0.0, s_t, jnp.float32(-1e30)),
                        axis=0, keepdims=True)                       # (1, TQ)
        m_sum = jnp.sum(s_t * cnt, axis=0, keepdims=True)            # (1, TQ)
        m_ref[0, 0] = m_max - m_sum * inv_lk                         # lane-dense store

    out = pl.pallas_call(
        kernel,
        out_shape=jax.ShapeDtypeStruct((B, H, 1, L_Q), jnp.float32),
        # q-tile outermost so the (b,h)-independent counts block is fetched once per tile
        # and the revisit-skip keeps it resident across all B*H inner steps.
        grid=(pl.cdiv(L_Q, tq), B, H),
        in_specs=[
            pl.BlockSpec((L_K, tq), lambda qi, b, h: (0, qi)),
            pl.BlockSpec((1, 1, tq, D), lambda qi, b, h: (b, h, qi, 0)),
            pl.BlockSpec((1, 1, L_K, D), lambda qi, b, h: (b, h, 0, 0)),
        ],
        out_specs=pl.BlockSpec((1, 1, 1, tq), lambda qi, b, h: (b, h, 0, qi)),
        compiler_params=pltpu.CompilerParams(
            dimension_semantics=("parallel", "parallel", "parallel")),
    )(counts_T, Q, K)
    return out[:, :, 0, :]                                           # (B, H, L_Q)


# ------------------------------------------------------------------ fused ProbSparse attention
def prob_attention(q_top, k, v, scale):
    """Per-(b,h) fused kernel:
         scores = (scale * Q_top) @ K^T   (bf16 MXU, f32 acc)
         attn   = softmax(scores)         (f32, approx-reciprocal denom on EUP)
         ctx    = attn @ V                (bf16 MXU, f32 acc)
         v_mean = ones(1,L_K) @ V / L_K   (MXU reduction -- no f32 copy of V)

    q_top: (B,H,U,D) bf16 (U = padded n_top), k/v: (B,H,L_K,D) bf16.
    TODO(synk): for very long L_K additionally tile L_K with an online-softmax accumulator.
    """
    B, H, U, D = q_top.shape
    L_K = k.shape[2]
    inv_lk = 1.0 / float(L_K)

    def kernel(q_ref, k_ref, v_ref, attn_ref, ctx_ref, vmean_ref):
        q = (q_ref[0, 0].astype(jnp.float32) * scale).astype(jnp.bfloat16)   # (U, D)
        kk = k_ref[0, 0]                                                     # (L_K, D)
        vv = v_ref[0, 0]                                                     # (L_K, D)

        s = jax.lax.dot_general(q, kk, (((1,), (1,)), ((), ())),
                                preferred_element_type=jnp.float32)          # (U, L_K)
        m = jnp.max(s, axis=-1, keepdims=True)
        p = jnp.exp(s - m)
        l = jnp.sum(p, axis=-1, keepdims=True)
        a = p * pl.reciprocal(l, approx=True)                                # EUP slot
        attn_ref[0, 0] = a

        ctx_ref[0, 0] = jnp.dot(a.astype(jnp.bfloat16), vv,
                                preferred_element_type=jnp.float32)          # (U, D)

        ones_row = jnp.ones((1, L_K), dtype=jnp.bfloat16)
        vmean_ref[0, 0] = jnp.dot(ones_row, vv,
                                  preferred_element_type=jnp.float32) * inv_lk  # (1, D)

    return pl.pallas_call(
        kernel,
        out_shape=(
            jax.ShapeDtypeStruct((B, H, U, L_K), jnp.float32),
            jax.ShapeDtypeStruct((B, H, U, D), jnp.float32),
            jax.ShapeDtypeStruct((B, H, 1, D), jnp.float32),
        ),
        grid=(B, H),
        in_specs=[
            pl.BlockSpec((1, 1, U, D), lambda b, h: (b, h, 0, 0)),
            pl.BlockSpec((1, 1, L_K, D), lambda b, h: (b, h, 0, 0)),
            pl.BlockSpec((1, 1, L_K, D), lambda b, h: (b, h, 0, 0)),
        ],
        out_specs=(
            pl.BlockSpec((1, 1, U, L_K), lambda b, h: (b, h, 0, 0)),
            pl.BlockSpec((1, 1, U, D), lambda b, h: (b, h, 0, 0)),
            pl.BlockSpec((1, 1, 1, D), lambda b, h: (b, h, 0, 0)),
        ),
        compiler_params=pltpu.CompilerParams(
            dimension_semantics=("parallel", "parallel")),
    )(q_top, k, v)


# ------------------------------------------------------------------ model glue
def init_params(hidden_dim, key):
    ks = jax.random.split(key, 8)

    def lin(kw, kb):
        # weights bf16 (halved HBM traffic, bf16 MXU); bias f32.  y = x @ w + b
        w = (jax.random.normal(kw, (hidden_dim, hidden_dim), jnp.float32) * 0.05
             ).astype(jnp.bfloat16)
        b = jax.random.normal(kb, (hidden_dim,), jnp.float32) * 0.05
        return w, b

    return dict(W_q=lin(ks[0], ks[1]), W_k=lin(ks[2], ks[3]),
                W_v=lin(ks[4], ks[5]), fc_out=lin(ks[6], ks[7]))


def cross_attention_prob(params, q, k, v, *, num_heads, factor=5, sample_key=None):
    B, L_Q, hidden = q.shape
    L_K = k.shape[1]
    H = num_heads
    D = hidden // H

    # cast activations to bf16 in the wrapper (halves projection input DMA)
    q16 = q.astype(jnp.bfloat16)
    k16 = k.astype(jnp.bfloat16)
    v16 = v.astype(jnp.bfloat16)

    # projections, emitted directly in (B, H, L, D) head-major layout (no XLA transpose pass)
    Q = linear_proj_heads(q16, *params["W_q"], H)        # (B, H, L_Q, D) bf16
    K = linear_proj_heads(k16, *params["W_k"], H)        # (B, H, L_K, D) bf16
    V = linear_proj_heads(v16, *params["W_v"], H)        # (B, H, L_K, D) bf16

    U_part = min(factor * int(math.ceil(math.log(L_K))), L_K)   # sample_k
    u = min(factor * int(math.ceil(math.log(L_Q))), L_Q)        # n_top

    # _prob_QK: per-query random key sample (shared across B,H like torch.randint).
    # Encoded as a small count matrix (L_K, L_Q) so the measure kernel needs no gather
    # and no (B,H,L_Q,U_part,D) HBM tensor.
    index_sample = jax.random.randint(sample_key, (L_Q, U_part), 0, L_K)
    counts = jnp.zeros((L_Q, L_K), jnp.float32).at[
        jnp.arange(L_Q)[:, None], index_sample].add(1.0)
    counts_T = counts.T.astype(jnp.bfloat16)             # exact small integers

    M = sparsity_measure(Q, K, counts_T, L_K)            # (B, H, L_Q) f32
    _, M_top = jax.lax.top_k(M, u)                       # (B, H, u)

    # gather only the top-u query rows, pad to a multiple of 8 sublanes
    Q_top = jnp.take_along_axis(Q, M_top[..., None], axis=2)     # (B, H, u, D) bf16
    u_pad = -(-u // 8) * 8
    if u_pad != u:
        Q_top = jnp.pad(Q_top, ((0, 0), (0, 0), (0, u_pad - u), (0, 0)))

    scale = 1.0 / math.sqrt(D)
    attn_p, ctx_p, v_mean = prob_attention(Q_top, K, V, scale)
    attn = attn_p[:, :, :u, :]                           # (B, H, u, L_K) f32
    ctx_top = ctx_p[:, :, :u, :]                         # (B, H, u, D)   f32

    # _get_initial_context (mask_flag=False) + _update_context scatter
    context = jnp.broadcast_to(v_mean, (B, H, L_Q, D))
    context = context.at[
        jnp.arange(B)[:, None, None], jnp.arange(H)[None, :, None], M_top
    ].set(ctx_top)

    # (B, H, L_Q, D) -> (B, L_Q, H*D), then fc_out (Pallas, bf16 input stream)
    # TODO(synk): fold this transpose into the attention/scatter stage as well.
    context = context.transpose(0, 2, 1, 3).reshape(B, L_Q, hidden)
    out = linear(context.reshape(B * L_Q, hidden).astype(jnp.bfloat16),
                 *params["fc_out"], out_dtype=jnp.float32).reshape(B, L_Q, hidden)

    # NOTE: reference defines attention dropout but never applies it in forward.
    return out, attn, M_top


# ------------------------------------------------------------------ main
if __name__ == "__main__":
    B, L_Q, L_K, hidden, H = 2, 16, 16, 32, 4
    key = jax.random.PRNGKey(0)
    kq, kk, kv, kparam, ksample = jax.random.split(key, 5)

    q = jax.random.normal(kq, (B, L_Q, hidden), jnp.float32)
    k = jax.random.normal(kk, (B, L_K, hidden), jnp.float32)
    v = jax.random.normal(kv, (B, L_K, hidden), jnp.float32)

    params = init_params(hidden, kparam)

    out, attn, index = cross_attention_prob(
        params, q, k, v, num_heads=H, factor=5, sample_key=ksample
    )
    jax.block_until_ready((out, attn, index))

    assert out.shape == (B, L_Q, hidden)
    assert attn.shape[:2] == (B, H) and attn.shape[-1] == L_K
    assert index.shape[:2] == (B, H)
    assert bool(jnp.all(jnp.isfinite(out)))
    assert bool(jnp.all(jnp.isfinite(attn)))
    print("KERNEL_OK")
</pallas_src>

<mosaic_0001>
module attributes {stable_mosaic.version = 11 : i64} {
  func.func @kernel(%arg0: i32, %arg1: i32, %arg2: memref<1x16x32xbf16, #tpu.memory_space<vmem>>, %arg3: memref<32x32xbf16, #tpu.memory_space<vmem>>, %arg4: memref<1x32xf32, #tpu.memory_space<vmem>>, %arg5: memref<1x4x16x8xbf16, #tpu.memory_space<vmem>>) attributes {dimension_semantics = [#tpu.dimension_semantics<parallel>, #tpu.dimension_semantics<parallel>], iteration_bounds = array<i64: 2, 1>, scalar_prefetch = 0 : i64, scratch_operands = 0 : i64, tpu.core_type = #tpu.core_type<tc>, window_params = [{transform_indices = @transform_0, window_bounds = array<i64: 1, 16, 32>}, {pipeline_mode = #tpu.pipeline_mode<synchronous>, transform_indices = @transform_1, window_bounds = array<i64: 32, 32>}, {pipeline_mode = #tpu.pipeline_mode<synchronous>, transform_indices = @transform_2, window_bounds = array<i64: 1, 32>}, {transform_indices = @transform_3, window_bounds = array<i64: 1, 4, 16, 8>}]} {
    %c0 = arith.constant 0 : index
    %c0_0 = arith.constant 0 : index
    %c0_1 = arith.constant 0 : index
    %0 = vector.load %arg2[%c0, %c0_0, %c0_1] : memref<1x16x32xbf16, #tpu.memory_space<vmem>>, vector<1x16x32xbf16>
    %1 = vector.shape_cast %0 : vector<1x16x32xbf16> to vector<16x32xbf16>
    %c0_2 = arith.constant 0 : index
    %c0_3 = arith.constant 0 : index
    %2 = vector.load %arg3[%c0_2, %c0_3] : memref<32x32xbf16, #tpu.memory_space<vmem>>, vector<32x32xbf16>
    %cst = arith.constant dense<0.000000e+00> : vector<16x32xf32>
    %3 = tpu.matmul %1, %2, %cst {dimension_numbers = #tpu.dot_dimension_numbers<[1], [0], [0], [1], [0, 0, 1, 1], [], []>} : vector<16x32xbf16>, vector<32x32xbf16>, vector<16x32xf32> -> vector<16x32xf32>
    %c0_4 = arith.constant 0 : index
    %c0_5 = arith.constant 0 : index
    %4 = vector.load %arg4[%c0_4, %c0_5] : memref<1x32xf32, #tpu.memory_space<vmem>>, vector<1x32xf32>
    %5 = vector.broadcast %4 : vector<1x32xf32> to vector<16x32xf32>
    %6 = arith.addf %3, %5 : vector<16x32xf32>
    %7 = arith.truncf %6 : vector<16x32xf32> to vector<16x32xbf16>
    %8 = vector.extract_strided_slice %7 {offsets = [0, 0], sizes = [16, 8], strides = [1, 1]} : vector<16x32xbf16> to vector<16x8xbf16>
    %c0_6 = arith.constant 0 : index
    %c0_7 = arith.constant 0 : index
    %c0_8 = arith.constant 0 : index
    %c0_9 = arith.constant 0 : index
    %9 = vector.load %arg5[%c0_6, %c0_7, %c0_8, %c0_9] : memref<1x4x16x8xbf16, #tpu.memory_space<vmem>>, vector<1x1x16x8xbf16>
    %10 = vector.shape_cast %9 : vector<1x1x16x8xbf16> to vector<16x8xbf16>
    %11 = vector.shape_cast %8 : vector<16x8xbf16> to vector<1x1x16x8xbf16>
    tpu.vector_store %arg5[%c0_6, %c0_7, %c0_8, %c0_9], %11 {strides = array<i32>} : memref<1x4x16x8xbf16, #tpu.memory_space<vmem>>, vector<1x1x16x8xbf16>,
    %12 = vector.extract_strided_slice %7 {offsets = [0, 8], sizes = [16, 8], strides = [1, 1]} : vector<16x32xbf16> to vector<16x8xbf16>
    %c0_10 = arith.constant 0 : index
    %c1 = arith.constant 1 : index
    %c0_11 = arith.constant 0 : index
    %c0_12 = arith.constant 0 : index
    %13 = vector.load %arg5[%c0_10, %c1, %c0_11, %c0_12] : memref<1x4x16x8xbf16, #tpu.memory_space<vmem>>, vector<1x1x16x8xbf16>
    %14 = vector.shape_cast %13 : vector<1x1x16x8xbf16> to vector<16x8xbf16>
    %15 = vector.shape_cast %12 : vector<16x8xbf16> to vector<1x1x16x8xbf16>
    tpu.vector_store %arg5[%c0_10, %c1, %c0_11, %c0_12], %15 {strides = array<i32>} : memref<1x4x16x8xbf16, #tpu.memory_space<vmem>>, vector<1x1x16x8xbf16>,
    %16 = vector.extract_strided_slice %7 {offsets = [0, 16], sizes = [16, 8], strides = [1, 1]} : vector<16x32xbf16> to vector<16x8xbf16>
    %c0_13 = arith.constant 0 : index
    %c2 = arith.constant 2 : index
    %c0_14 = arith.constant 0 : index
    %c0_15 = arith.constant 0 : index
    %17 = vector.load %arg5[%c0_13, %c2, %c0_14, %c0_15] : memref<1x4x16x8xbf16, #tpu.memory_space<vmem>>, vector<1x1x16x8xbf16>
    %18 = vector.shape_cast %17 : vector<1x1x16x8xbf16> to vector<16x8xbf16>
    %19 = vector.shape_cast %16 : vector<16x8xbf16> to vector<1x1x16x8xbf16>
    tpu.vector_store %arg5[%c0_13, %c2, %c0_14, %c0_15], %19 {strides = array<i32>} : memref<1x4x16x8xbf16, #tpu.memory_space<vmem>>, vector<1x1x16x8xbf16>,
    %20 = vector.extract_strided_slice %7 {offsets = [0, 24], sizes = [16, 8], strides = [1, 1]} : vector<16x32xbf16> to vector<16x8xbf16>
    %c0_16 = arith.constant 0 : index
    %c3 = arith.constant 3 : index
    %c0_17 = arith.constant 0 : index
    %c0_18 = arith.constant 0 : index
    %21 = vector.load %arg5[%c0_16, %c3, %c0_17, %c0_18] : memref<1x4x16x8xbf16, #tpu.memory_space<vmem>>, vector<1x1x16x8xbf16>
    %22 = vector.shape_cast %21 : vector<1x1x16x8xbf16> to vector<16x8xbf16>
    %23 = vector.shape_cast %20 : vector<16x8xbf16> to vector<1x1x16x8xbf16>
    tpu.vector_store %arg5[%c0_16, %c3, %c0_17, %c0_18], %23 {strides = array<i32>} : memref<1x4x16x8xbf16, #tpu.memory_space<vmem>>, vector<1x1x16x8xbf16>,
    return
  }
  func.func @transform_0(%arg0: i32, %arg1: i32) -> (i32, i32, i32) {
    %c0_i32 = arith.constant 0 : i32
    %c0_i32_0 = arith.constant 0 : i32
    return %arg0, %arg1, %c0_i32 : i32, i32, i32
  }
  func.func @transform_1(%arg0: i32, %arg1: i32) -> (i32, i32) {
    %c0_i32 = arith.constant 0 : i32
    %c0_i32_0 = arith.constant 0 : i32
    %c0_i32_1 = arith.constant 0 : i32
    return %c0_i32, %c0_i32_0 : i32, i32
  }
  func.func @transform_2(%arg0: i32, %arg1: i32) -> (i32, i32) {
    %c0_i32 = arith.constant 0 : i32
    %c0_i32_0 = arith.constant 0 : i32
    %c0_i32_1 = arith.constant 0 : i32
    return %c0_i32, %c0_i32_0 : i32, i32
  }
  func.func @transform_3(%arg0: i32, %arg1: i32) -> (i32, i32, i32, i32) {
    %c0_i32 = arith.constant 0 : i32
    %c0_i32_0 = arith.constant 0 : i32
    %c0_i32_1 = arith.constant 0 : i32
    return %arg0, %c0_i32, %arg1, %c0_i32_0 : i32, i32, i32, i32
  }
}

</mosaic_0001>

<llo_original>
// kernel: tpu_custom_call.1
$region0: #{tpu_custom_call.1}
  #allocation0 [shape = 'u32[]', space=smem, size = 0x4, offset = 0x4, fixed_abs, tag = 'smem constant byte address 0x4 - core index']
  #allocation1 [shape = 'u32[144,128]{1,0:T(1,128)}', space=vmem, size = 0x12000, scoped, tag = 'internal scratch']
  %s0 = inlined_call_operand.hbm [shape: bf16[2,16,32], index: 0, kind: input, shape index: {}]
  %s1 = inlined_call_operand.hbm [shape: bf16[32,32], index: 1, kind: input, shape index: {}]
  %s2 = inlined_call_operand.vmem [shape: f32[1,32], index: 2, kind: input, shape index: {}]
  %s3 = inlined_call_operand.vmem [shape: bf16[2,4,16,8], index: 3, kind: output, shape index: {}]
  %s4 = sld [smem:[#allocation0]]
  $region53: #{tpu_custom_call.1} parent=0
    _
  %s6 = ssub.s32 1, %s4
  %s7 = scalar_select 0, %s6, %s4
  $region1: #{tpu_custom_call.1} parent=0
    #allocation2 [shape = 'u8[8192]{0}', space=vmem, size = 0x2000, scoped, tag = 'input window, operand 0']
    #allocation3 [shape = 's32[2]{0}', space=sflag, size = 0x8, scoped, tag = 'scoped memory for tpu_custom_call.1']
    #allocation4 [shape = 'u8[8192]{0}', space=vmem, size = 0x2000, scoped, tag = 'input window, operand 1, single buffered']
    #allocation5 [shape = 's32[1]{0}', space=sflag, size = 0x4, scoped, tag = 'scoped memory for tpu_custom_call.1']
    %8 = vsyncpa [#allocation3], 0
    %s9 = scalar_lea.sflag [#allocation3], 1
    %10 = vsyncpa %s9, 0
    %11 = vsyncpa [#allocation5], 0
    loop: start=0, step=1, limit=4
    $region2: #{tpu_custom_call.1} parent=1 // loop_pre_header
      _
    $region3: #{tpu_custom_call.1} parent=1 // loop_header
      %s13 = sphi 0, %s17
      %p14 = scmp.ge.s32.totalorder %s13, 4
      %s20 = sphi 0, %s32
      %s21 = sphi 0, %s28
      %s22 = sphi 0, %s20
      %s23 = sphi 0, %s21
      %s24 = sphi 0, %s22
      %s25 = sphi 0, %s23
      %s37 = sphi 0, %s39
      %s40 = sphi 0, %s37
      %s41 = sphi 0, %s40
      %s57 = sphi 0, %s41
      %s61 = sphi 0, %s61
      %s63 = sphi 0, %s61
      %s64 = sphi 0, %s63
      %s78 = sphi 0, %s64
      %s82 = sphi 0, %s82
      %s84 = sphi 0, %s82
      %s85 = sphi 0, %s84
      %s99 = sphi 0, %s85
      %s107 = sphi 0, %s109
      %s110 = sphi 0, %s107
      %s111 = sphi 0, %s110
      %s127 = sphi 0, %s111
    $region4: #{tpu_custom_call.1} parent=1 // loop_header_branch
      %16 = sbr.rel (%p14) target = $region8
    $region5: #{tpu_custom_call.1} parent=1 // loop_body
      %s18 = ssub.s32 %s13, 1
      %s19 = ssub.s32 %s13, 2
      %s26 = sadd.s32 1, %s21
      %p27 = scmp.ge.s32.totalorder %s26, 1
      %s28 = scalar_select %p27, 0, %s26
      %s29 = sadd.s32 1, %s20
      %s30 = scalar_select %p27, %s29, %s20
      %p31 = scmp.ge.s32.totalorder %s30, 2
      %s32 = scalar_select %p31, 0, %s30
      %s33 = ssub.s32 %s20, %s32
      %s34 = ssub.s32 %s21, %s28
      %s35 = sor.u32 %s33, %s34
      %p36 = scmp.eq.s32.totalorder %s35, 0
      %s38 = sadd.s32 %s37, 1
      %s39 = scalar_select %p36, %s37, %s38
      %p42 = pneg %p36
      %p43 = scmp.eq.s32.totalorder %s13, 1
      %p44 = por %p42, %p43
      %p45 = scmp.ne.s32.totalorder %s37, %s40
      %p46 = scmp.eq.s32.totalorder %s13, 0
      %p47 = por %p45, %p46
      %p48 = scmp.ne.s32.totalorder %s37, %s40
      %p49 = scmp.eq.s32.totalorder %s18, 1
      %p50 = por %p48, %p49
      %p51 = scmp.ne.s32.totalorder %s40, %s41
      %p52 = scmp.eq.s32.totalorder %s18, 0
      %p53 = por %p51, %p52
      %p54 = scmp.ne.s32.totalorder %s40, %s41
      %p55 = scmp.eq.s32.totalorder %s19, 1
      %p56 = por %p54, %p55
      %p58 = scmp.ne.s32.totalorder %s41, %s57
      %p59 = scmp.eq.s32.totalorder %s19, 0
      %p60 = por %p58, %p59
      %s62 = sadd.s32 %s61, 1
      %p65 = scmp.eq.s32.totalorder %s13, 1
      %p66 = scmp.ne.s32.totalorder %s61, %s63
      %p67 = scmp.eq.s32.totalorder %s13, 0
      %p68 = por %p66, %p67
      %p69 = scmp.ne.s32.totalorder %s61, %s63
      %p70 = scmp.eq.s32.totalorder %s18, 1
      %p71 = por %p69, %p70
      %p72 = scmp.ne.s32.totalorder %s63, %s64
      %p73 = scmp.eq.s32.totalorder %s18, 0
      %p74 = por %p72, %p73
      %p75 = scmp.ne.s32.totalorder %s63, %s64
      %p76 = scmp.eq.s32.totalorder %s19, 1
      %p77 = por %p75, %p76
      %p79 = scmp.ne.s32.totalorder %s64, %s78
      %p80 = scmp.eq.s32.totalorder %s19, 0
      %p81 = por %p79, %p80
      %s83 = sadd.s32 %s82, 1
      %p86 = scmp.eq.s32.totalorder %s13, 1
      %p87 = scmp.ne.s32.totalorder %s82, %s84
      %p88 = scmp.eq.s32.totalorder %s13, 0
      %p89 = por %p87, %p88
      %p90 = scmp.ne.s32.totalorder %s82, %s84
      %p91 = scmp.eq.s32.totalorder %s18, 1
      %p92 = por %p90, %p91
      %p93 = scmp.ne.s32.totalorder %s84, %s85
      %p94 = scmp.eq.s32.totalorder %s18, 0
      %p95 = por %p93, %p94
      %p96 = scmp.ne.s32.totalorder %s84, %s85
      %p97 = scmp.eq.s32.totalorder %s19, 1
      %p98 = por %p96, %p97
      %p100 = scmp.ne.s32.totalorder %s85, %s99
      %p101 = scmp.eq.s32.totalorder %s19, 0
      %p102 = por %p100, %p101
      %s103 = ssub.s32 %s20, %s32
      %s104 = ssub.s32 %s21, %s28
      %s105 = sor.u32 %s103, %s104
      %p106 = scmp.eq.s32.totalorder %s105, 0
      %s108 = sadd.s32 %s107, 1
      %s109 = scalar_select %p106, %s107, %s108
      %p112 = pneg %p106
      %p113 = scmp.eq.s32.totalorder %s13, 1
      %p114 = por %p112, %p113
      %p115 = scmp.ne.s32.totalorder %s107, %s110
      %p116 = scmp.eq.s32.totalorder %s13, 0
      %p117 = por %p115, %p116
      %p118 = scmp.ne.s32.totalorder %s107, %s110
      %p119 = scmp.eq.s32.totalorder %s18, 1
      %p120 = por %p118, %p119
      %p121 = scmp.ne.s32.totalorder %s110, %s111
      %p122 = scmp.eq.s32.totalorder %s18, 0
      %p123 = por %p121, %p122
      %p124 = scmp.ne.s32.totalorder %s110, %s111
      %p125 = scmp.eq.s32.totalorder %s19, 1
      %p126 = por %p124, %p125
      %p128 = scmp.ne.s32.totalorder %s111, %s127
      %p129 = scmp.eq.s32.totalorder %s19, 0
      %p130 = por %p128, %p129
      %p131 = scmp.le.s32.totalorder 1, %s13
      %p132 = scmp.lt.s32.totalorder %s13, 3
      %p133 = pnand %p131, %p132
      %p134 = pneg %p133
      // Predicated region
      $region9: #{tpu_custom_call.1} parent=5 // pred_check
        _
      $region10: #{tpu_custom_call.1} parent=5 // pred_check_branch
        %136 = sbr.rel (%p133) target = $region12
      $region11: #{tpu_custom_call.1} parent=5 // pred_region
        %s137 = ssub.s32 %s13, 1
        // Predicated region
        $region13: #{tpu_custom_call.1} parent=11 // pred_check
          %p138 = pneg %p74
        $region14: #{tpu_custom_call.1} parent=11 // pred_check_branch
          %140 = sbr.rel (%p138) target = $region16
        $region15: #{tpu_custom_call.1} parent=11 // pred_region
          %s142 = ssub.s32 256, 256
          %143 = vsyncadd [#allocation5], %s142
          %s144 = sshll.u32 [#allocation4], 4
          %s145 = int_to_ptr.vmem [resolvable:$true] %s144
          %150 = dma.hbm_to_vmem [thread:$0]  %s1, 256, %s145, [#allocation5], 64, 64, 4
        $region16: #{tpu_custom_call.1} parent=11 // pred_fallthru
          _
        // Predicated region
        $region17: #{tpu_custom_call.1} parent=11 // pred_check
          %p151 = pneg %p95
        $region18: #{tpu_custom_call.1} parent=11 // pred_check_branch
          %153 = sbr.rel (%p151) target = $region20
        $region19: #{tpu_custom_call.1} parent=11 // pred_region
          _
        $region20: #{tpu_custom_call.1} parent=11 // pred_fallthru
          _
      $region12: #{tpu_custom_call.1} parent=5 // pred_fallthru
        _
      %p154 = scmp.lt.s32.totalorder %s13, 2
      // Predicated region
      $region21: #{tpu_custom_call.1} parent=5 // pred_check
        %p155 = pneg %p154
      $region22: #{tpu_custom_call.1} parent=5 // pred_check_branch
        %157 = sbr.rel (%p155) target = $region24
      $region23: #{tpu_custom_call.1} parent=5 // pred_region
        // Predicated region
        $region25: #{tpu_custom_call.1} parent=23 // pred_check
          %p158 = pneg %p47
        $region26: #{tpu_custom_call.1} parent=23 // pred_check_branch
          %160 = sbr.rel (%p158) target = $region28
        $region27: #{tpu_custom_call.1} parent=23 // pred_region
          %s161 = sand.u32 %s37, 1
          %s162 = scalar_lea.sflag [#allocation3], %s161
          %s163 = sand.u32 %s37, 1
          %s164 = smul.addr %s163, 8
          %s165 = scalar_lea.vmem [#allocation2], %s164
          %s166 = smul.u32 2, %s21
          %s168 = ssub.s32 128, 128
          %169 = vsyncadd %s162, %s168
          %s170 = smul.addr %s20, 2
          %s171 = sadd.s32 %s166, %s170
          %s172 = smul.addr %s171, 64
          %s173 = scalar_lea.hbm %s0, %s172
          %s174 = sshll.u32 %s165, 4
          %s175 = int_to_ptr.vmem [resolvable:$true] %s174
          %180 = dma.hbm_to_vmem [thread:$0]  %s173, 128, %s175, %s162, 64, 64, 4
        $region28: #{tpu_custom_call.1} parent=23 // pred_fallthru
          _
      $region24: #{tpu_custom_call.1} parent=5 // pred_fallthru
        _
      %p181 = scmp.le.s32.totalorder 1, %s13
      %p182 = scmp.lt.s32.totalorder %s13, 3
      %p183 = pnand %p181, %p182
      %p184 = pneg %p183
      // Predicated region
      $region29: #{tpu_custom_call.1} parent=5 // pred_check
        _
      $region30: #{tpu_custom_call.1} parent=5 // pred_check_branch
        %186 = sbr.rel (%p183) target = $region32
      $region31: #{tpu_custom_call.1} parent=5 // pred_region
        %s187 = ssub.s32 %s13, 1
        %s188 = sand.u32 %s40, 1
        %s189 = scalar_lea.sflag [#allocation3], %s188
        %s190 = sand.u32 %s40, 1
        %s191 = smul.addr %s190, 8
        %s192 = scalar_lea.vmem [#allocation2], %s191
        // Predicated region
        $region33: #{tpu_custom_call.1} parent=31 // pred_check
          %p193 = pneg %p53
        $region34: #{tpu_custom_call.1} parent=31 // pred_check_branch
          %195 = sbr.rel (%p193) target = $region36
        $region35: #{tpu_custom_call.1} parent=31 // pred_region
          %196 = dma.done %s189, 128
        $region36: #{tpu_custom_call.1} parent=31 // pred_fallthru
          _
        // Predicated region
        $region37: #{tpu_custom_call.1} parent=31 // pred_check
          %p197 = pneg %p74
        $region38: #{tpu_custom_call.1} parent=31 // pred_check_branch
          %199 = sbr.rel (%p197) target = $region40
        $region39: #{tpu_custom_call.1} parent=31 // pred_region
          %200 = dma.done [#allocation5], 256
        $region40: #{tpu_custom_call.1} parent=31 // pred_fallthru
          _
        %s201 = sand.u32 %s40, 1
        %s202 = scalar_lea.sflag [#allocation3], %s201
        %s203 = sand.u32 %s40, 1
        %s204 = smul.addr %s203, 8
        %s205 = scalar_lea.vmem [#allocation2], %s204
        %p206 = pneg %p53
        %p207 = pneg %p50
        %p208 = pneg %p74
        %p209 = pneg %p71
        %p210 = pneg %p95
        %p211 = pneg %p92
        %p212 = pneg %p123
        %p213 = pneg %p120
        %s214 = smul.u32 2, %s23
        %p215 = scmp.lt.s32.totalorder %s22, 1
        %s216 = scalar_select %p215, %s22, 1
        %p217 = scmp.lt.s32.totalorder %s214, 1
        %s218 = scalar_select %p217, %s214, 1
        %s219 = smul.addr %s216, 8
        %s220 = sadd.s32 %s218, %s219
        %s221 = smul.addr %s220, 4
        %s222 = scalar_lea.vmem %s3, %s221
        %s223 = smul.u32 2, %s23
        %s224 = smul.u32 2, %s23
        %p225 = scmp.lt.s32.totalorder %s22, 1
        %s226 = scalar_select %p225, %s22, 1
        %p227 = scmp.lt.s32.totalorder %s224, 1
        %s228 = scalar_select %p227, %s224, 1
        %s229 = smul.addr %s226, 8
        %s230 = sadd.s32 %s228, %s229
        %s231 = smul.addr %s230, 4
        %s232 = scalar_lea.vmem %s3, %s231
        %s233 = smul.u32 2, %s23
        %v235 = vld [vmem:[%s192] sm:$0xf]
        %v236 = vld [vmem:[%s192 + $0x4] sm:$0xf]
        %v237 = vld [vmem:[#allocation4] sm:$0xf]
        %v238 = vld [vmem:[#allocation4 + $0x4] sm:$0xf]
        %v239 = vld [vmem:[#allocation4 + $0x8] sm:$0xf]
        %v240 = vld [vmem:[#allocation4 + $0xc] sm:$0xf]
        %v241 = vld [vmem:[%s2] sm:$0x1]
        %v243 = vlaneseq
        %v244 = vshrl.u32 %v243, 7
        %v245 = vsub.s32 0, %v244
        %v246 = vrot.slane %v241, %v245
        %v250 = vunpack.c.l.b16 %v235
        %v251 = vunpack.c.l.b16 %v236
        %v252 = vpack.c.b16 %v251, %v250
        %v257 = vunpack.c.l.b16 %v237
        %v258 = vunpack.c.l.b16 %v238
        %v259 = vunpack.c.l.b16 %v239
        %v260 = vunpack.c.l.b16 %v240
        %v261 = vpack.c.b16 %v258, %v257
        %v262 = vpack.c.b16 %v260, %v259
        %vm265 = vcmask 261120
        %v267 = vsel %vm265, %v252, 0
        %269 = vmatprep.subr.bf16.mxu0 0
        %270 = vmatpush1.bf16.msra.mxu0 0
        %271 = vmatprep.subr.bf16.mxu0 0
        %272 = vmatpush1.bf16.msra.mxu0 0
        %273 = vmatprep.subr.bf16.mxu0 0
        %274 = vmatpush1.bf16.msra.mxu0 0
        %275 = vmatprep.subr.bf16.mxu0 0
        %276 = vmatpush1.bf16.msra.mxu0 0
        %277 = vmatprep.subr.bf16.mxu0 0
        %278 = vmatpush1.bf16.msra.mxu0 0
        %279 = vmatprep.subr.bf16.mxu0 0
        %280 = vmatpush1.bf16.msra.mxu0 0
        %281 = vmatprep.subr.bf16.mxu0 0
        %282 = vmatpush1.bf16.msra.mxu0 %v262
        %283 = vmatprep.subr.bf16.mxu0 0
        %284 = vmatpush1.bf16.msra.mxu0 %v261
        %285 = vmatprep.subr.bf16.mxu0 0
        %286 = vmatpush2.bf16.msra.mxu0 0
        %287 = vmatprep.subr.bf16.mxu0 0
        %288 = vmatpush2.bf16.msra.mxu0 0
        %289 = vmatprep.subr.bf16.mxu0 0
        %290 = vmatpush2.bf16.msra.mxu0 0
        %291 = vmatprep.subr.bf16.mxu0 0
        %292 = vmatpush2.bf16.msra.mxu0 0
        %293 = vmatprep.subr.bf16.mxu0 0
        %294 = vmatpush2.bf16.msra.mxu0 0
        %295 = vmatprep.subr.bf16.mxu0 0
        %296 = vmatpush2.bf16.msra.mxu0 0
        %297 = vmatprep.subr.bf16.mxu0 0
        %298 = vmatpush2.bf16.msra.mxu0 0
        %299 = vmatprep.subr.bf16.mxu0 0
        %300 = vmatpush2.bf16.msra.mxu0 0
        %301 = vmatprep.mubr.bf16.mxu0 0
        %302 = vmatmul.mubr.bf16.gmra.mxu0 %v267
        %v303 = vpop.f32.mrf.mxu0
        %v304 = vadd.f32 %v246, %v303
        %v305 = vpop.f32.mrf.mxu0
        %v306 = vpop.f32.mrf.mxu0
        %v307 = vadd.f32 %v246, %v306
        %v308 = vpop.f32.mrf.mxu0
        %309 = vdwg.mxu0
        %v310 = vpack.c.bf16 %v307, %v304
        %v312 = vunpack.c.l.b16 %v310
        %v313 = vunpack.c.h.b16 %v310
        %v314 = vpack.c.b16 %v312, %v312
        %v315 = vpack.c.b16 %v313, %v313
        %vm318 = vcmask 60416
        %319 = vst.msk [vmem:[%s232] sm:$0xf] %vm318, %v314
        %320 = vst.msk [vmem:[%s232 + $0x4] sm:$0xf] %vm318, %v315
        %321 = vrot.lane.b32.xlu0 %v314, 120
        %v322 = vpop.permute.xlu0 %321
        %323 = vrot.lane.b32.xlu0 %v315, 120
        %v324 = vpop.permute.xlu0 %323
        %s327 = scalar_lea.vmem %s232, 8
        %328 = vst.msk [vmem:[%s327] sm:$0xf] %vm318, %v322
        %329 = vst.msk [vmem:[%s327 + $0x4] sm:$0xf] %vm318, %v324
        %330 = vrot.lane.b32.xlu0 %v314, 112
        %v331 = vpop.permute.xlu0 %330
        %332 = vrot.lane.b32.xlu0 %v315, 112
        %v333 = vpop.permute.xlu0 %332
        %s336 = scalar_lea.vmem %s232, 16
        %337 = vst.msk [vmem:[%s336] sm:$0xf] %vm318, %v331
        %338 = vst.msk [vmem:[%s336 + $0x4] sm:$0xf] %vm318, %v333
        %339 = vrot.lane.b32.xlu0 %v314, 104
        %v340 = vpop.permute.xlu0 %339
        %341 = vrot.lane.b32.xlu0 %v315, 104
        %v342 = vpop.permute.xlu0 %341
        %s345 = scalar_lea.vmem %s232, 24
        %346 = vst.msk [vmem:[%s345] sm:$0xf] %vm318, %v340
        %347 = vst.msk [vmem:[%s345 + $0x4] sm:$0xf] %vm318, %v342
        %s348 = smul.u32 2, %s23
        %p349 = scmp.lt.s32.totalorder %s22, 1
        %s350 = scalar_select %p349, %s22, 1
        %p351 = scmp.lt.s32.totalorder %s348, 1
        %s352 = scalar_select %p351, %s348, 1
        %s353 = smul.addr %s350, 8
        %s354 = sadd.s32 %s352, %s353
        %s355 = smul.addr %s354, 4
        %s356 = scalar_lea.vmem %s3, %s355
        // Predicated region
        $region41: #{tpu_custom_call.1} parent=31 // pred_check
          %p357 = pneg %p120
        $region42: #{tpu_custom_call.1} parent=31 // pred_check_branch
          %359 = sbr.rel (%p357) target = $region44
        $region43: #{tpu_custom_call.1} parent=31 // pred_region
          %s360 = smul.u32 2, %s23
        $region44: #{tpu_custom_call.1} parent=31 // pred_fallthru
          _
      $region32: #{tpu_custom_call.1} parent=5 // pred_fallthru
        _
      %p361 = scmp.le.s32.totalorder 2, %s13
      // Predicated region
      $region45: #{tpu_custom_call.1} parent=5 // pred_check
        %p362 = pneg %p361
      $region46: #{tpu_custom_call.1} parent=5 // pred_check_branch
        %364 = sbr.rel (%p362) target = $region48
      $region47: #{tpu_custom_call.1} parent=5 // pred_region
        %s365 = ssub.s32 %s13, 2
        // Predicated region
        $region49: #{tpu_custom_call.1} parent=47 // pred_check
          %p366 = pneg %p126
        $region50: #{tpu_custom_call.1} parent=47 // pred_check_branch
          %368 = sbr.rel (%p366) target = $region52
        $region51: #{tpu_custom_call.1} parent=47 // pred_region
          %s369 = smul.u32 2, %s25
          %p370 = scmp.lt.s32.totalorder %s24, 1
          %s371 = scalar_select %p370, %s24, 1
          %p372 = scmp.lt.s32.totalorder %s369, 1
          %s373 = scalar_select %p372, %s369, 1
          %s374 = smul.addr %s371, 8
          %s375 = sadd.s32 %s373, %s374
          %s376 = smul.addr %s375, 4
          %s377 = scalar_lea.vmem %s3, %s376
        $region52: #{tpu_custom_call.1} parent=47 // pred_fallthru
          _
      $region48: #{tpu_custom_call.1} parent=5 // pred_fallthru
        _
    $region6: #{tpu_custom_call.1} parent=1 // loop_footer
      %s17 = sadd.s32 1, %s13
    $region7: #{tpu_custom_call.1} parent=1 // loop_footer_branch
      %12 = sbr.rel target = $region3
    $region8: #{tpu_custom_call.1} parent=1 // loop_exit
      _
    %378 = vsyncpa [#allocation3], 1
    %s379 = scalar_lea.sflag [#allocation3], 1
    %380 = vsyncpa %s379, 1
    %381 = vsyncpa [#allocation5], 1

</llo_original>
